<compile_context>
chip_gen: v6e
topology: v6e:2x2x1
jax: 0.10.0
libtpu: 0.0.40
codegen_flags: <defaults>
</compile_context>

<pallas_src>
import functools

import jax
import jax.numpy as jnp
from jax.experimental import pallas as pl
from jax.experimental.pallas import tpu as pltpu


def _info_nce_kernel(pos_ref, img_ref, neg_ref, loss_ref, *, total_b):
    """One batch tile: writes masked per-row InfoNCE losses to loss_ref."""
    tile_b, d = pos_ref.shape

    pos = pos_ref[...].astype(jnp.float32)
    img = img_ref[...].astype(jnp.float32)
    neg = neg_ref[...].astype(jnp.float32)

    # Row-sums go to the (otherwise idle) MXU via a ones matmul instead of a
    # cross-lane XLU rotate/add chain: five lane reductions would saturate the
    # 2 XLUs for D <= ~512 while HBM still has headroom.  A single bf16 pass
    # would cost ~1e-3 relative error on the sums, so split each f32 product
    # into hi+lo bf16 halves and accumulate both passes in f32 (error ~1e-6,
    # well inside the 1e-5 tolerance vs. the f32 reference).
    ones_rhs = jnp.ones((d, 128), dtype=jnp.bfloat16)

    def rowsum(p):                                    # (tile_b, d) -> (tile_b, 1)
        hi = p.astype(jnp.bfloat16)
        lo = (p - hi.astype(jnp.float32)).astype(jnp.bfloat16)
        s = jnp.dot(hi, ones_rhs, preferred_element_type=jnp.float32)
        s = s + jnp.dot(lo, ones_rhs, preferred_element_type=jnp.float32)
        return s[:, 0:1]

    ss_pos = rowsum(pos * pos)
    ss_img = rowsum(img * img)
    ss_neg = rowsum(neg * neg)
    dot_pi = rowsum(pos * img)
    dot_ni = rowsum(neg * img)

    # rsqrt(max(ss, eps^2)) == 1 / max(||x||, eps): exact F.normalize clamp.
    eps2 = jnp.float32(1e-12)
    inv_img = jax.lax.rsqrt(jnp.maximum(ss_img, eps2))
    s_pos = dot_pi * jax.lax.rsqrt(jnp.maximum(ss_pos, eps2)) * inv_img
    s_neg = dot_ni * jax.lax.rsqrt(jnp.maximum(ss_neg, eps2)) * inv_img

    # -log(exp(s_pos) / (exp(s_pos) + exp(s_neg))) == log1p(exp(s_neg - s_pos))
    loss = jnp.log1p(jnp.exp(s_neg - s_pos))          # (tile_b, 1)

    # Zero rows past the true batch (the ragged final tile holds undefined
    # data; the select does not propagate NaN/Inf from those rows).
    row = (pl.program_id(0) * tile_b
           + jax.lax.broadcasted_iota(jnp.int32, loss.shape, 0))
    loss_ref[...] = jnp.where(row < total_b, loss, jnp.float32(0.0))


def _vmem_limit_bytes():
    # Per-chip scoped-VMEM request: ~3/4 of physical, capped at 80 MiB
    # (v5e/v6e: 128 MiB physical -> 80 MiB; v7x: 64 MiB physical -> 48 MiB).
    phys = 64 * 1024 * 1024
    try:
        phys = int(pltpu.get_tpu_info().vmem_capacity_bytes)
    except Exception:
        pass
    return min((phys * 3) // 4, 80 * 1024 * 1024)


def _choose_tile_b(B, D, itemsize, vmem_limit):
    # Sublane tile for the input dtype (f32: 8, bf16: 16, int8/fp8: 32).
    sub = {1: 32, 2: 16}.get(itemsize, 8)
    if B <= sub:
        return B                       # a single full-extent block is always legal
    # Per-row VMEM: 3 double-buffered input rows (input dtype) + ~8 f32-sized
    # in-kernel temporaries (casts / products / bf16 halves / matmul partials)
    # + the lane-padded (tile_b, 1) loss block and its pipeline buffers.
    per_row = D * (3 * 2 * itemsize + 8 * 4) + 3 * 128 * 4
    usable = (vmem_limit * 3) // 4
    rows = max(sub, usable // per_row)
    # Cap per-step DMA around 32 MiB: past that the ~0.35us fixed grid-step
    # overhead is already <1% and bigger tiles only add VMEM pressure.
    rows = min(rows, max(sub, (32 * 1024 * 1024) // (3 * D * itemsize)))
    rows = max(sub, (rows // sub) * sub)
    return min(rows, B)


def info_nce_loss(pos_shape_feat, img_feat, neg_shape_feat, *, tile_b=None):
    assert pos_shape_feat.shape == img_feat.shape == neg_shape_feat.shape
    B, D = pos_shape_feat.shape
    itemsize = jnp.dtype(pos_shape_feat.dtype).itemsize
    vmem_limit = _vmem_limit_bytes()
    if tile_b is None:
        tile_b = _choose_tile_b(B, D, itemsize, vmem_limit)
    num_tiles = pl.cdiv(B, tile_b)

    kernel = functools.partial(_info_nce_kernel, total_b=B)
    in_spec = pl.BlockSpec((tile_b, D), lambda i: (i, 0))
    # TODO(synk): if an xprof trace shows exposed DMA at this tile size, add
    # pipeline_mode=pl.Buffered(3) to the input specs.

    per_row = pl.pallas_call(
        kernel,
        out_shape=jax.ShapeDtypeStruct((num_tiles * tile_b, 1), jnp.float32),
        grid=(num_tiles,),
        in_specs=[in_spec, in_spec, in_spec],
        out_specs=pl.BlockSpec((tile_b, 1), lambda i: (i, 0)),
        compiler_params=pltpu.CompilerParams(
            dimension_semantics=("parallel",),
            vmem_limit_bytes=int(vmem_limit)),
        cost_estimate=pl.CostEstimate(
            flops=int(10 * B * D),
            transcendentals=int(5 * B),
            bytes_accessed=int(3 * B * D * itemsize + num_tiles * tile_b * 4)),
    )(pos_shape_feat, img_feat, neg_shape_feat)

    # Masked / padded rows hold exact zeros, so sum over the padded output
    # divided by the true batch is the required mean.
    return jnp.sum(per_row) / B


def _reference(pos, img, neg):
    # Pure-JAX reference (same math as the PyTorch module).
    def norm(x):
        n = jnp.linalg.norm(x, axis=1, keepdims=True)
        return x / jnp.maximum(n, 1e-6)

    pos, img, neg = norm(pos), norm(img), norm(neg)
    num = jnp.exp(jnp.sum(pos * img, axis=1))
    den = num + jnp.exp(jnp.sum(neg * img, axis=1))
    return jnp.mean(-jnp.log(num / den))


if __name__ == "__main__":
    key = jax.random.PRNGKey(0)
    ks = jax.random.split(key, 9)

    # Case 1: small single-tile run (matches the module's (B, D) features).
    B, D = 8, 128
    pos = jax.random.normal(ks[0], (B, D), dtype=jnp.float32)
    img = jax.random.normal(ks[1], (B, D), dtype=jnp.float32)
    neg = jax.random.normal(ks[2], (B, D), dtype=jnp.float32)
    loss = jax.block_until_ready(info_nce_loss(pos, img, neg))
    ref = _reference(pos, img, neg)
    assert jnp.allclose(loss, ref, atol=1e-5, rtol=1e-5), (loss, ref)

    # Case 2: multi-tile grid with a ragged final tile (padded-row masking).
    B2, D2 = 24, 256
    pos2 = jax.random.normal(ks[3], (B2, D2), dtype=jnp.float32)
    img2 = jax.random.normal(ks[4], (B2, D2), dtype=jnp.float32)
    neg2 = jax.random.normal(ks[5], (B2, D2), dtype=jnp.float32)
    loss2 = jax.block_until_ready(info_nce_loss(pos2, img2, neg2, tile_b=16))
    ref2 = _reference(pos2, img2, neg2)
    assert jnp.allclose(loss2, ref2, atol=1e-5, rtol=1e-5), (loss2, ref2)

    # Case 3: bf16 features passed straight through (no wrapper upcast); the
    # reference is computed on the same values upcast to f32.
    B3, D3 = 16, 128
    pos3 = jax.random.normal(ks[6], (B3, D3), dtype=jnp.float32).astype(jnp.bfloat16)
    img3 = jax.random.normal(ks[7], (B3, D3), dtype=jnp.float32).astype(jnp.bfloat16)
    neg3 = jax.random.normal(ks[8], (B3, D3), dtype=jnp.float32).astype(jnp.bfloat16)
    loss3 = jax.block_until_ready(info_nce_loss(pos3, img3, neg3))
    ref3 = _reference(pos3.astype(jnp.float32), img3.astype(jnp.float32),
                      neg3.astype(jnp.float32))
    assert jnp.allclose(loss3, ref3, atol=1e-5, rtol=1e-5), (loss3, ref3)

    print("KERNEL_OK")
</pallas_src>

<mosaic_0001>
module attributes {stable_mosaic.version = 11 : i64} {
  func.func @_info_nce_kernel(%arg0: i32, %arg1: memref<8x128xf32, #tpu.memory_space<vmem>>, %arg2: memref<8x128xf32, #tpu.memory_space<vmem>>, %arg3: memref<8x128xf32, #tpu.memory_space<vmem>>, %arg4: memref<8x1xf32, #tpu.memory_space<vmem>>) attributes {dimension_semantics = [#tpu.dimension_semantics<parallel>], iteration_bounds = array<i64: 1>, scalar_prefetch = 0 : i64, scratch_operands = 0 : i64, tpu.core_type = #tpu.core_type<tc>, window_params = [{transform_indices = @transform_0, window_bounds = array<i64: 8, 128>}, {transform_indices = @transform_1, window_bounds = array<i64: 8, 128>}, {transform_indices = @transform_2, window_bounds = array<i64: 8, 128>}, {transform_indices = @transform_3, window_bounds = array<i64: 8, 1>}]} {
    %c0 = arith.constant 0 : index
    %c0_0 = arith.constant 0 : index
    %0 = vector.load %arg1[%c0, %c0_0] : memref<8x128xf32, #tpu.memory_space<vmem>>, vector<8x128xf32>
    %c0_1 = arith.constant 0 : index
    %c0_2 = arith.constant 0 : index
    %1 = vector.load %arg2[%c0_1, %c0_2] : memref<8x128xf32, #tpu.memory_space<vmem>>, vector<8x128xf32>
    %c0_3 = arith.constant 0 : index
    %c0_4 = arith.constant 0 : index
    %2 = vector.load %arg3[%c0_3, %c0_4] : memref<8x128xf32, #tpu.memory_space<vmem>>, vector<8x128xf32>
    %cst = arith.constant 1.000000e+00 : bf16
    %3 = vector.broadcast %cst : bf16 to vector<128x128xbf16>
    %4 = arith.mulf %0, %0 : vector<8x128xf32>
    %5 = arith.truncf %4 : vector<8x128xf32> to vector<8x128xbf16>
    %6 = arith.extf %5 : vector<8x128xbf16> to vector<8x128xf32>
    %7 = arith.subf %4, %6 : vector<8x128xf32>
    %8 = arith.truncf %7 : vector<8x128xf32> to vector<8x128xbf16>
    %cst_5 = arith.constant dense<0.000000e+00> : vector<8x128xf32>
    %9 = tpu.matmul %5, %3, %cst_5 {dimension_numbers = #tpu.dot_dimension_numbers<[1], [0], [0], [1], [0, 0, 1, 1], [], []>} : vector<8x128xbf16>, vector<128x128xbf16>, vector<8x128xf32> -> vector<8x128xf32>
    %cst_6 = arith.constant dense<0.000000e+00> : vector<8x128xf32>
    %10 = tpu.matmul %8, %3, %cst_6 {dimension_numbers = #tpu.dot_dimension_numbers<[1], [0], [0], [1], [0, 0, 1, 1], [], []>} : vector<8x128xbf16>, vector<128x128xbf16>, vector<8x128xf32> -> vector<8x128xf32>
    %11 = arith.addf %9, %10 : vector<8x128xf32>
    %12 = vector.extract_strided_slice %11 {offsets = [0, 0], sizes = [8, 1], strides = [1, 1]} : vector<8x128xf32> to vector<8x1xf32>
    %13 = arith.mulf %1, %1 : vector<8x128xf32>
    %14 = arith.truncf %13 : vector<8x128xf32> to vector<8x128xbf16>
    %15 = arith.extf %14 : vector<8x128xbf16> to vector<8x128xf32>
    %16 = arith.subf %13, %15 : vector<8x128xf32>
    %17 = arith.truncf %16 : vector<8x128xf32> to vector<8x128xbf16>
    %cst_7 = arith.constant dense<0.000000e+00> : vector<8x128xf32>
    %18 = tpu.matmul %14, %3, %cst_7 {dimension_numbers = #tpu.dot_dimension_numbers<[1], [0], [0], [1], [0, 0, 1, 1], [], []>} : vector<8x128xbf16>, vector<128x128xbf16>, vector<8x128xf32> -> vector<8x128xf32>
    %cst_8 = arith.constant dense<0.000000e+00> : vector<8x128xf32>
    %19 = tpu.matmul %17, %3, %cst_8 {dimension_numbers = #tpu.dot_dimension_numbers<[1], [0], [0], [1], [0, 0, 1, 1], [], []>} : vector<8x128xbf16>, vector<128x128xbf16>, vector<8x128xf32> -> vector<8x128xf32>
    %20 = arith.addf %18, %19 : vector<8x128xf32>
    %21 = vector.extract_strided_slice %20 {offsets = [0, 0], sizes = [8, 1], strides = [1, 1]} : vector<8x128xf32> to vector<8x1xf32>
    %22 = arith.mulf %2, %2 : vector<8x128xf32>
    %23 = arith.truncf %22 : vector<8x128xf32> to vector<8x128xbf16>
    %24 = arith.extf %23 : vector<8x128xbf16> to vector<8x128xf32>
    %25 = arith.subf %22, %24 : vector<8x128xf32>
    %26 = arith.truncf %25 : vector<8x128xf32> to vector<8x128xbf16>
    %cst_9 = arith.constant dense<0.000000e+00> : vector<8x128xf32>
    %27 = tpu.matmul %23, %3, %cst_9 {dimension_numbers = #tpu.dot_dimension_numbers<[1], [0], [0], [1], [0, 0, 1, 1], [], []>} : vector<8x128xbf16>, vector<128x128xbf16>, vector<8x128xf32> -> vector<8x128xf32>
    %cst_10 = arith.constant dense<0.000000e+00> : vector<8x128xf32>
    %28 = tpu.matmul %26, %3, %cst_10 {dimension_numbers = #tpu.dot_dimension_numbers<[1], [0], [0], [1], [0, 0, 1, 1], [], []>} : vector<8x128xbf16>, vector<128x128xbf16>, vector<8x128xf32> -> vector<8x128xf32>
    %29 = arith.addf %27, %28 : vector<8x128xf32>
    %30 = vector.extract_strided_slice %29 {offsets = [0, 0], sizes = [8, 1], strides = [1, 1]} : vector<8x128xf32> to vector<8x1xf32>
    %31 = arith.mulf %0, %1 : vector<8x128xf32>
    %32 = arith.truncf %31 : vector<8x128xf32> to vector<8x128xbf16>
    %33 = arith.extf %32 : vector<8x128xbf16> to vector<8x128xf32>
    %34 = arith.subf %31, %33 : vector<8x128xf32>
    %35 = arith.truncf %34 : vector<8x128xf32> to vector<8x128xbf16>
    %cst_11 = arith.constant dense<0.000000e+00> : vector<8x128xf32>
    %36 = tpu.matmul %32, %3, %cst_11 {dimension_numbers = #tpu.dot_dimension_numbers<[1], [0], [0], [1], [0, 0, 1, 1], [], []>} : vector<8x128xbf16>, vector<128x128xbf16>, vector<8x128xf32> -> vector<8x128xf32>
    %cst_12 = arith.constant dense<0.000000e+00> : vector<8x128xf32>
    %37 = tpu.matmul %35, %3, %cst_12 {dimension_numbers = #tpu.dot_dimension_numbers<[1], [0], [0], [1], [0, 0, 1, 1], [], []>} : vector<8x128xbf16>, vector<128x128xbf16>, vector<8x128xf32> -> vector<8x128xf32>
    %38 = arith.addf %36, %37 : vector<8x128xf32>
    %39 = vector.extract_strided_slice %38 {offsets = [0, 0], sizes = [8, 1], strides = [1, 1]} : vector<8x128xf32> to vector<8x1xf32>
    %40 = arith.mulf %2, %1 : vector<8x128xf32>
    %41 = arith.truncf %40 : vector<8x128xf32> to vector<8x128xbf16>
    %42 = arith.extf %41 : vector<8x128xbf16> to vector<8x128xf32>
    %43 = arith.subf %40, %42 : vector<8x128xf32>
    %44 = arith.truncf %43 : vector<8x128xf32> to vector<8x128xbf16>
    %cst_13 = arith.constant dense<0.000000e+00> : vector<8x128xf32>
    %45 = tpu.matmul %41, %3, %cst_13 {dimension_numbers = #tpu.dot_dimension_numbers<[1], [0], [0], [1], [0, 0, 1, 1], [], []>} : vector<8x128xbf16>, vector<128x128xbf16>, vector<8x128xf32> -> vector<8x128xf32>
    %cst_14 = arith.constant dense<0.000000e+00> : vector<8x128xf32>
    %46 = tpu.matmul %44, %3, %cst_14 {dimension_numbers = #tpu.dot_dimension_numbers<[1], [0], [0], [1], [0, 0, 1, 1], [], []>} : vector<8x128xbf16>, vector<128x128xbf16>, vector<8x128xf32> -> vector<8x128xf32>
    %47 = arith.addf %45, %46 : vector<8x128xf32>
    %48 = vector.extract_strided_slice %47 {offsets = [0, 0], sizes = [8, 1], strides = [1, 1]} : vector<8x128xf32> to vector<8x1xf32>
    %cst_15 = arith.constant 9.99999996E-13 : f32
    %49 = vector.broadcast %cst_15 : f32 to vector<8x1xf32>
    %50 = arith.maximumf %21, %49 : vector<8x1xf32>
    %51 = math.rsqrt %50 : vector<8x1xf32>
    %cst_16 = arith.constant 9.99999996E-13 : f32
    %52 = vector.broadcast %cst_16 : f32 to vector<8x1xf32>
    %53 = arith.maximumf %12, %52 : vector<8x1xf32>
    %54 = math.rsqrt %53 : vector<8x1xf32>
    %55 = arith.mulf %39, %54 : vector<8x1xf32>
    %56 = arith.mulf %55, %51 : vector<8x1xf32>
    %cst_17 = arith.constant 9.99999996E-13 : f32
    %57 = vector.broadcast %cst_17 : f32 to vector<8x1xf32>
    %58 = arith.maximumf %30, %57 : vector<8x1xf32>
    %59 = math.rsqrt %58 : vector<8x1xf32>
    %60 = arith.mulf %48, %59 : vector<8x1xf32>
    %61 = arith.mulf %60, %51 : vector<8x1xf32>
    %62 = arith.subf %61, %56 : vector<8x1xf32>
    %63 = math.exp %62 : vector<8x1xf32>
    %64 = math.log1p %63 : vector<8x1xf32>
    %c8_i32 = arith.constant 8 : i32
    %65 = arith.muli %arg0, %c8_i32 : i32
    %66 = tpu.iota {dimensions = array<i32: 0>} : vector<8x1xi32>
    %67 = vector.broadcast %65 : i32 to vector<8x1xi32>
    %68 = arith.addi %67, %66 : vector<8x1xi32>
    %c8_i32_18 = arith.constant 8 : i32
    %69 = vector.broadcast %c8_i32_18 : i32 to vector<8x1xi32>
    %70 = arith.cmpi slt, %68, %69 : vector<8x1xi32>
    %cst_19 = arith.constant 0.000000e+00 : f32
    %71 = vector.broadcast %cst_19 : f32 to vector<8x1xf32>
    %72 = arith.select %70, %64, %71 : vector<8x1xi1>, vector<8x1xf32>
    %c0_20 = arith.constant 0 : index
    %c0_21 = arith.constant 0 : index
    %73 = vector.load %arg4[%c0_20, %c0_21] : memref<8x1xf32, #tpu.memory_space<vmem>>, vector<8x1xf32>
    tpu.vector_store %arg4[%c0_20, %c0_21], %72 {strides = array<i32>} : memref<8x1xf32, #tpu.memory_space<vmem>>, vector<8x1xf32>,
    return
  }
  func.func @transform_0(%arg0: i32) -> (i32, i32) {
    %c0_i32 = arith.constant 0 : i32
    %c0_i32_0 = arith.constant 0 : i32
    return %arg0, %c0_i32 : i32, i32
  }
  func.func @transform_1(%arg0: i32) -> (i32, i32) {
    %c0_i32 = arith.constant 0 : i32
    %c0_i32_0 = arith.constant 0 : i32
    return %arg0, %c0_i32 : i32, i32
  }
  func.func @transform_2(%arg0: i32) -> (i32, i32) {
    %c0_i32 = arith.constant 0 : i32
    %c0_i32_0 = arith.constant 0 : i32
    return %arg0, %c0_i32 : i32, i32
  }
  func.func @transform_3(%arg0: i32) -> (i32, i32) {
    %c0_i32 = arith.constant 0 : i32
    %c0_i32_0 = arith.constant 0 : i32
    return %arg0, %c0_i32 : i32, i32
  }
}

</mosaic_0001>

<llo_original>
// kernel: tpu_custom_call.1
$region0: #{tpu_custom_call.1}
  #allocation0 [shape = 'u32[]', space=smem, size = 0x4, offset = 0x4, fixed_abs, tag = 'smem constant byte address 0x4 - core index']
  #allocation1 [shape = 'u32[144,128]{1,0:T(1,128)}', space=vmem, size = 0x12000, scoped, tag = 'internal scratch']
  %s0 = inlined_call_operand.hbm [shape: f32[8,128], index: 0, kind: input, shape index: {}]
  %s1 = inlined_call_operand.hbm [shape: f32[8,128], index: 1, kind: input, shape index: {}]
  %s2 = inlined_call_operand.hbm [shape: f32[8,128], index: 2, kind: input, shape index: {}]
  %s3 = inlined_call_operand.vmem [shape: f32[8,1], index: 3, kind: output, shape index: {}]
  %s4 = sld [smem:[#allocation0]]
  $region34: #{tpu_custom_call.1} parent=0
    _
  %s6 = ssub.s32 1, %s4
  %s7 = scalar_select 0, %s6, %s4
  $region1: #{tpu_custom_call.1} parent=0
    #allocation2 [shape = 'u8[4096]{0}', space=vmem, size = 0x1000, scoped, tag = 'input window, operand 0, single buffered']
    #allocation3 [shape = 's32[1]{0}', space=sflag, size = 0x4, scoped, tag = 'scoped memory for tpu_custom_call.1']
    #allocation4 [shape = 'u8[4096]{0}', space=vmem, size = 0x1000, scoped, tag = 'input window, operand 1, single buffered']
    #allocation5 [shape = 's32[1]{0}', space=sflag, size = 0x4, scoped, tag = 'scoped memory for tpu_custom_call.1']
    #allocation6 [shape = 'u8[4096]{0}', space=vmem, size = 0x1000, scoped, tag = 'input window, operand 2, single buffered']
    %8 = vsyncpa [#allocation3], 0
    %9 = vsyncpa [#allocation5], 0
    // Predicated region
    $region2: #{tpu_custom_call.1} parent=1 // pred_check
      _
    $region3: #{tpu_custom_call.1} parent=1 // pred_check_branch
      %11 = sbr.rel (0) target = $region5
    $region4: #{tpu_custom_call.1} parent=1 // pred_region
      %s13 = ssub.s32 128, 128
      %14 = vsyncadd [#allocation3], %s13
      %s16 = sshll.u32 [#allocation2], 4
      %s17 = int_to_ptr.vmem [resolvable:$true] %s16
      %19 = dma.hbm_to_vmem [thread:$0]  %s0, 128, %s17, [#allocation3]
    $region5: #{tpu_custom_call.1} parent=1 // pred_fallthru
      _
    // Predicated region
    $region6: #{tpu_custom_call.1} parent=1 // pred_check
      _
    $region7: #{tpu_custom_call.1} parent=1 // pred_check_branch
      %21 = sbr.rel (0) target = $region9
    $region8: #{tpu_custom_call.1} parent=1 // pred_region
      %s23 = ssub.s32 128, 128
      %24 = vsyncadd [#allocation5], %s23
      %s26 = sshll.u32 [#allocation4], 4
      %s27 = int_to_ptr.vmem [resolvable:$true] %s26
      %29 = dma.hbm_to_vmem [thread:$0]  %s1, 128, %s27, [#allocation5]
    $region9: #{tpu_custom_call.1} parent=1 // pred_fallthru
      _
    // Predicated region
    $region10: #{tpu_custom_call.1} parent=1 // pred_check
      _
    $region11: #{tpu_custom_call.1} parent=1 // pred_check_branch
      %31 = sbr.rel (0) target = $region13
    $region12: #{tpu_custom_call.1} parent=1 // pred_region
      %s33 = ssub.s32 128, 128
      %34 = vsyncadd [#allocation5], %s33
      %s36 = sshll.u32 [#allocation6], 4
      %s37 = int_to_ptr.vmem [resolvable:$true] %s36
      %39 = dma.hbm_to_vmem [thread:$0]  %s2, 128, %s37, [#allocation5]
    $region13: #{tpu_custom_call.1} parent=1 // pred_fallthru
      _
    // Predicated region
    $region14: #{tpu_custom_call.1} parent=1 // pred_check
      _
    $region15: #{tpu_custom_call.1} parent=1 // pred_check_branch
      %41 = sbr.rel (0) target = $region17
    $region16: #{tpu_custom_call.1} parent=1 // pred_region
      %42 = dma.done [#allocation3], 128
    $region17: #{tpu_custom_call.1} parent=1 // pred_fallthru
      _
    // Predicated region
    $region18: #{tpu_custom_call.1} parent=1 // pred_check
      _
    $region19: #{tpu_custom_call.1} parent=1 // pred_check_branch
      %44 = sbr.rel (0) target = $region21
    $region20: #{tpu_custom_call.1} parent=1 // pred_region
      %45 = dma.done [#allocation5], 128
    $region21: #{tpu_custom_call.1} parent=1 // pred_fallthru
      _
    // Predicated region
    $region22: #{tpu_custom_call.1} parent=1 // pred_check
      _
    $region23: #{tpu_custom_call.1} parent=1 // pred_check_branch
      %47 = sbr.rel (0) target = $region25
    $region24: #{tpu_custom_call.1} parent=1 // pred_region
      %48 = dma.done [#allocation5], 128
    $region25: #{tpu_custom_call.1} parent=1 // pred_fallthru
      _
    %v51 = vld [vmem:[#allocation2] sm:$0xff]
    %v52 = vld [vmem:[#allocation4] sm:$0xff]
    %v53 = vld [vmem:[#allocation6] sm:$0xff]
    %v54 = vmul.f32 %v51, %v51
    %v55 = vpack.c.bf16 %v54, %v54
    %v56 = vunpack.c.l.bf16 %v55
    %v57 = vsub.f32 %v54, %v56
    %v58 = vpack.c.bf16 %v57, %v57
    %59 = vmatprep.subr.bf16.mxu0 0
    %60 = vmatpush1.bf16.msra.mxu0 1065369472
    %61 = vmatprep.subr.bf16.mxu0 0
    %62 = vmatpush1.bf16.msra.mxu0 1065369472
    %63 = vmatprep.subr.bf16.mxu0 0
    %64 = vmatpush1.bf16.msra.mxu0 1065369472
    %65 = vmatprep.subr.bf16.mxu0 0
    %66 = vmatpush1.bf16.msra.mxu0 1065369472
    %67 = vmatprep.subr.bf16.mxu0 0
    %68 = vmatpush1.bf16.msra.mxu0 1065369472
    %69 = vmatprep.subr.bf16.mxu0 0
    %70 = vmatpush1.bf16.msra.mxu0 1065369472
    %71 = vmatprep.subr.bf16.mxu0 0
    %72 = vmatpush1.bf16.msra.mxu0 1065369472
    %73 = vmatprep.subr.bf16.mxu0 0
    %74 = vmatpush1.bf16.msra.mxu0 1065369472
    %75 = vmatprep.subr.bf16.mxu0 0
    %76 = vmatpush2.bf16.msra.mxu0 0
    %77 = vmatprep.subr.bf16.mxu0 0
    %78 = vmatpush2.bf16.msra.mxu0 0
    %79 = vmatprep.subr.bf16.mxu0 0
    %80 = vmatpush2.bf16.msra.mxu0 0
    %81 = vmatprep.subr.bf16.mxu0 0
    %82 = vmatpush2.bf16.msra.mxu0 0
    %83 = vmatprep.subr.bf16.mxu0 0
    %84 = vmatpush2.bf16.msra.mxu0 0
    %85 = vmatprep.subr.bf16.mxu0 0
    %86 = vmatpush2.bf16.msra.mxu0 0
    %87 = vmatprep.subr.bf16.mxu0 0
    %88 = vmatpush2.bf16.msra.mxu0 0
    %89 = vmatprep.subr.bf16.mxu0 0
    %90 = vmatpush2.bf16.msra.mxu0 0
    %91 = vmatprep.mubr.bf16.mxu0 0
    %92 = vmatmul.mubr.bf16.gmra.mxu0 %v58
    %v93 = vpop.f32.mrf.mxu0
    %v94 = vadd.f32 0.0, %v93
    %v95 = vpop.f32.mrf.mxu0
    %v96 = vpop.f32.mrf.mxu0
    %v97 = vpop.f32.mrf.mxu0
    %98 = vdwg.mxu0
    %99 = vmatprep.subr.bf16.mxu0 0
    %100 = vmatpush1.bf16.msra.mxu0 1065369472
    %101 = vmatprep.subr.bf16.mxu0 0
    %102 = vmatpush1.bf16.msra.mxu0 1065369472
    %103 = vmatprep.subr.bf16.mxu0 0
    %104 = vmatpush1.bf16.msra.mxu0 1065369472
    %105 = vmatprep.subr.bf16.mxu0 0
    %106 = vmatpush1.bf16.msra.mxu0 1065369472
    %107 = vmatprep.subr.bf16.mxu0 0
    %108 = vmatpush1.bf16.msra.mxu0 1065369472
    %109 = vmatprep.subr.bf16.mxu0 0
    %110 = vmatpush1.bf16.msra.mxu0 1065369472
    %111 = vmatprep.subr.bf16.mxu0 0
    %112 = vmatpush1.bf16.msra.mxu0 1065369472
    %113 = vmatprep.subr.bf16.mxu0 0
    %114 = vmatpush1.bf16.msra.mxu0 1065369472
    %115 = vmatprep.subr.bf16.mxu0 0
    %116 = vmatpush2.bf16.msra.mxu0 0
    %117 = vmatprep.subr.bf16.mxu0 0
    %118 = vmatpush2.bf16.msra.mxu0 0
    %119 = vmatprep.subr.bf16.mxu0 0
    %120 = vmatpush2.bf16.msra.mxu0 0
    %121 = vmatprep.subr.bf16.mxu0 0
    %122 = vmatpush2.bf16.msra.mxu0 0
    %123 = vmatprep.subr.bf16.mxu0 0
    %124 = vmatpush2.bf16.msra.mxu0 0
    %125 = vmatprep.subr.bf16.mxu0 0
    %126 = vmatpush2.bf16.msra.mxu0 0
    %127 = vmatprep.subr.bf16.mxu0 0
    %128 = vmatpush2.bf16.msra.mxu0 0
    %129 = vmatprep.subr.bf16.mxu0 0
    %130 = vmatpush2.bf16.msra.mxu0 0
    %131 = vmatprep.mubr.bf16.mxu0 0
    %132 = vmatmul.mubr.bf16.gmra.mxu0 %v55
    %v133 = vpop.f32.mrf.mxu0
    %v134 = vadd.f32 %v94, %v133
    %v135 = vpop.f32.mrf.mxu0
    %v136 = vpop.f32.mrf.mxu0
    %v137 = vpop.f32.mrf.mxu0
    %138 = vdwg.mxu0
    %v139 = vmul.f32 %v52, %v52
    %v140 = vpack.c.bf16 %v139, %v139
    %v141 = vunpack.c.l.bf16 %v140
    %v142 = vsub.f32 %v139, %v141
    %v143 = vpack.c.bf16 %v142, %v142
    %144 = vmatprep.subr.bf16.mxu0 0
    %145 = vmatpush1.bf16.msra.mxu0 1065369472
    %146 = vmatprep.subr.bf16.mxu0 0
    %147 = vmatpush1.bf16.msra.mxu0 1065369472
    %148 = vmatprep.subr.bf16.mxu0 0
    %149 = vmatpush1.bf16.msra.mxu0 1065369472
    %150 = vmatprep.subr.bf16.mxu0 0
    %151 = vmatpush1.bf16.msra.mxu0 1065369472
    %152 = vmatprep.subr.bf16.mxu0 0
    %153 = vmatpush1.bf16.msra.mxu0 1065369472
    %154 = vmatprep.subr.bf16.mxu0 0
    %155 = vmatpush1.bf16.msra.mxu0 1065369472
    %156 = vmatprep.subr.bf16.mxu0 0
    %157 = vmatpush1.bf16.msra.mxu0 1065369472
    %158 = vmatprep.subr.bf16.mxu0 0
    %159 = vmatpush1.bf16.msra.mxu0 1065369472
    %160 = vmatprep.subr.bf16.mxu0 0
    %161 = vmatpush2.bf16.msra.mxu0 0
    %162 = vmatprep.subr.bf16.mxu0 0
    %163 = vmatpush2.bf16.msra.mxu0 0
    %164 = vmatprep.subr.bf16.mxu0 0
    %165 = vmatpush2.bf16.msra.mxu0 0
    %166 = vmatprep.subr.bf16.mxu0 0
    %167 = vmatpush2.bf16.msra.mxu0 0
    %168 = vmatprep.subr.bf16.mxu0 0
    %169 = vmatpush2.bf16.msra.mxu0 0
    %170 = vmatprep.subr.bf16.mxu0 0
    %171 = vmatpush2.bf16.msra.mxu0 0
    %172 = vmatprep.subr.bf16.mxu0 0
    %173 = vmatpush2.bf16.msra.mxu0 0
    %174 = vmatprep.subr.bf16.mxu0 0
    %175 = vmatpush2.bf16.msra.mxu0 0
    %176 = vmatprep.mubr.bf16.mxu0 0
    %177 = vmatmul.mubr.bf16.gmra.mxu0 %v143
    %v178 = vpop.f32.mrf.mxu0
    %v179 = vadd.f32 0.0, %v178
    %v180 = vpop.f32.mrf.mxu0
    %v181 = vpop.f32.mrf.mxu0
    %v182 = vpop.f32.mrf.mxu0
    %183 = vdwg.mxu0
    %184 = vmatprep.subr.bf16.mxu0 0
    %185 = vmatpush1.bf16.msra.mxu0 1065369472
    %186 = vmatprep.subr.bf16.mxu0 0
    %187 = vmatpush1.bf16.msra.mxu0 1065369472
    %188 = vmatprep.subr.bf16.mxu0 0
    %189 = vmatpush1.bf16.msra.mxu0 1065369472
    %190 = vmatprep.subr.bf16.mxu0 0
    %191 = vmatpush1.bf16.msra.mxu0 1065369472
    %192 = vmatprep.subr.bf16.mxu0 0
    %193 = vmatpush1.bf16.msra.mxu0 1065369472
    %194 = vmatprep.subr.bf16.mxu0 0
    %195 = vmatpush1.bf16.msra.mxu0 1065369472
    %196 = vmatprep.subr.bf16.mxu0 0
    %197 = vmatpush1.bf16.msra.mxu0 1065369472
    %198 = vmatprep.subr.bf16.mxu0 0
    %199 = vmatpush1.bf16.msra.mxu0 1065369472
    %200 = vmatprep.subr.bf16.mxu0 0
    %201 = vmatpush2.bf16.msra.mxu0 0
    %202 = vmatprep.subr.bf16.mxu0 0
    %203 = vmatpush2.bf16.msra.mxu0 0
    %204 = vmatprep.subr.bf16.mxu0 0
    %205 = vmatpush2.bf16.msra.mxu0 0
    %206 = vmatprep.subr.bf16.mxu0 0
    %207 = vmatpush2.bf16.msra.mxu0 0
    %208 = vmatprep.subr.bf16.mxu0 0
    %209 = vmatpush2.bf16.msra.mxu0 0
    %210 = vmatprep.subr.bf16.mxu0 0
    %211 = vmatpush2.bf16.msra.mxu0 0
    %212 = vmatprep.subr.bf16.mxu0 0
    %213 = vmatpush2.bf16.msra.mxu0 0
    %214 = vmatprep.subr.bf16.mxu0 0
    %215 = vmatpush2.bf16.msra.mxu0 0
    %216 = vmatprep.mubr.bf16.mxu0 0
    %217 = vmatmul.mubr.bf16.gmra.mxu0 %v140
    %v218 = vpop.f32.mrf.mxu0
    %v219 = vadd.f32 %v179, %v218
    %v220 = vpop.f32.mrf.mxu0
    %v221 = vpop.f32.mrf.mxu0
    %v222 = vpop.f32.mrf.mxu0
    %223 = vdwg.mxu0
    %v224 = vmul.f32 %v53, %v53
    %v225 = vpack.c.bf16 %v224, %v224
    %v226 = vunpack.c.l.bf16 %v225
    %v227 = vsub.f32 %v224, %v226
    %v228 = vpack.c.bf16 %v227, %v227
    %229 = vmatprep.subr.bf16.mxu0 0
    %230 = vmatpush1.bf16.msra.mxu0 1065369472
    %231 = vmatprep.subr.bf16.mxu0 0
    %232 = vmatpush1.bf16.msra.mxu0 1065369472
    %233 = vmatprep.subr.bf16.mxu0 0
    %234 = vmatpush1.bf16.msra.mxu0 1065369472
    %235 = vmatprep.subr.bf16.mxu0 0
    %236 = vmatpush1.bf16.msra.mxu0 1065369472
    %237 = vmatprep.subr.bf16.mxu0 0
    %238 = vmatpush1.bf16.msra.mxu0 1065369472
    %239 = vmatprep.subr.bf16.mxu0 0
    %240 = vmatpush1.bf16.msra.mxu0 1065369472
    %241 = vmatprep.subr.bf16.mxu0 0
    %242 = vmatpush1.bf16.msra.mxu0 1065369472
    %243 = vmatprep.subr.bf16.mxu0 0
    %244 = vmatpush1.bf16.msra.mxu0 1065369472
    %245 = vmatprep.subr.bf16.mxu0 0
    %246 = vmatpush2.bf16.msra.mxu0 0
    %247 = vmatprep.subr.bf16.mxu0 0
    %248 = vmatpush2.bf16.msra.mxu0 0
    %249 = vmatprep.subr.bf16.mxu0 0
    %250 = vmatpush2.bf16.msra.mxu0 0
    %251 = vmatprep.subr.bf16.mxu0 0
    %252 = vmatpush2.bf16.msra.mxu0 0
    %253 = vmatprep.subr.bf16.mxu0 0
    %254 = vmatpush2.bf16.msra.mxu0 0
    %255 = vmatprep.subr.bf16.mxu0 0
    %256 = vmatpush2.bf16.msra.mxu0 0
    %257 = vmatprep.subr.bf16.mxu0 0
    %258 = vmatpush2.bf16.msra.mxu0 0
    %259 = vmatprep.subr.bf16.mxu0 0
    %260 = vmatpush2.bf16.msra.mxu0 0
    %261 = vmatprep.mubr.bf16.mxu0 0
    %262 = vmatmul.mubr.bf16.gmra.mxu0 %v228
    %v263 = vpop.f32.mrf.mxu0
    %v264 = vadd.f32 0.0, %v263
    %v265 = vpop.f32.mrf.mxu0
    %v266 = vpop.f32.mrf.mxu0
    %v267 = vpop.f32.mrf.mxu0
    %268 = vdwg.mxu0
    %269 = vmatprep.subr.bf16.mxu0 0
    %270 = vmatpush1.bf16.msra.mxu0 1065369472
    %271 = vmatprep.subr.bf16.mxu0 0
    %272 = vmatpush1.bf16.msra.mxu0 1065369472
    %273 = vmatprep.subr.bf16.mxu0 0
    %274 = vmatpush1.bf16.msra.mxu0 1065369472
    %275 = vmatprep.subr.bf16.mxu0 0
    %276 = vmatpush1.bf16.msra.mxu0 1065369472
    %277 = vmatprep.subr.bf16.mxu0 0
    %278 = vmatpush1.bf16.msra.mxu0 1065369472
    %279 = vmatprep.subr.bf16.mxu0 0
    %280 = vmatpush1.bf16.msra.mxu0 1065369472
    %281 = vmatprep.subr.bf16.mxu0 0
    %282 = vmatpush1.bf16.msra.mxu0 1065369472
    %283 = vmatprep.subr.bf16.mxu0 0
    %284 = vmatpush1.bf16.msra.mxu0 1065369472
    %285 = vmatprep.subr.bf16.mxu0 0
    %286 = vmatpush2.bf16.msra.mxu0 0
    %287 = vmatprep.subr.bf16.mxu0 0
    %288 = vmatpush2.bf16.msra.mxu0 0
    %289 = vmatprep.subr.bf16.mxu0 0
    %290 = vmatpush2.bf16.msra.mxu0 0
    %291 = vmatprep.subr.bf16.mxu0 0
    %292 = vmatpush2.bf16.msra.mxu0 0
    %293 = vmatprep.subr.bf16.mxu0 0
    %294 = vmatpush2.bf16.msra.mxu0 0
    %295 = vmatprep.subr.bf16.mxu0 0
    %296 = vmatpush2.bf16.msra.mxu0 0
    %297 = vmatprep.subr.bf16.mxu0 0
    %298 = vmatpush2.bf16.msra.mxu0 0
    %299 = vmatprep.subr.bf16.mxu0 0
    %300 = vmatpush2.bf16.msra.mxu0 0
    %301 = vmatprep.mubr.bf16.mxu0 0
    %302 = vmatmul.mubr.bf16.gmra.mxu0 %v225
    %v303 = vpop.f32.mrf.mxu0
    %v304 = vadd.f32 %v264, %v303
    %v305 = vpop.f32.mrf.mxu0
    %v306 = vpop.f32.mrf.mxu0
    %v307 = vpop.f32.mrf.mxu0
    %308 = vdwg.mxu0
    %v309 = vmul.f32 %v51, %v52
    %v310 = vpack.c.bf16 %v309, %v309
    %v311 = vunpack.c.l.bf16 %v310
    %v312 = vsub.f32 %v309, %v311
    %v313 = vpack.c.bf16 %v312, %v312
    %314 = vmatprep.subr.bf16.mxu0 0
    %315 = vmatpush1.bf16.msra.mxu0 1065369472
    %316 = vmatprep.subr.bf16.mxu0 0
    %317 = vmatpush1.bf16.msra.mxu0 1065369472
    %318 = vmatprep.subr.bf16.mxu0 0
    %319 = vmatpush1.bf16.msra.mxu0 1065369472
    %320 = vmatprep.subr.bf16.mxu0 0
    %321 = vmatpush1.bf16.msra.mxu0 1065369472
    %322 = vmatprep.subr.bf16.mxu0 0
    %323 = vmatpush1.bf16.msra.mxu0 1065369472
    %324 = vmatprep.subr.bf16.mxu0 0
    %325 = vmatpush1.bf16.msra.mxu0 1065369472
    %326 = vmatprep.subr.bf16.mxu0 0
    %327 = vmatpush1.bf16.msra.mxu0 1065369472
    %328 = vmatprep.subr.bf16.mxu0 0
    %329 = vmatpush1.bf16.msra.mxu0 1065369472
    %330 = vmatprep.subr.bf16.mxu0 0
    %331 = vmatpush2.bf16.msra.mxu0 0
    %332 = vmatprep.subr.bf16.mxu0 0
    %333 = vmatpush2.bf16.msra.mxu0 0
    %334 = vmatprep.subr.bf16.mxu0 0
    %335 = vmatpush2.bf16.msra.mxu0 0
    %336 = vmatprep.subr.bf16.mxu0 0
    %337 = vmatpush2.bf16.msra.mxu0 0
    %338 = vmatprep.subr.bf16.mxu0 0
    %339 = vmatpush2.bf16.msra.mxu0 0
    %340 = vmatprep.subr.bf16.mxu0 0
    %341 = vmatpush2.bf16.msra.mxu0 0
    %342 = vmatprep.subr.bf16.mxu0 0
    %343 = vmatpush2.bf16.msra.mxu0 0
    %344 = vmatprep.subr.bf16.mxu0 0
    %345 = vmatpush2.bf16.msra.mxu0 0
    %346 = vmatprep.mubr.bf16.mxu0 0
    %347 = vmatmul.mubr.bf16.gmra.mxu0 %v313
    %v348 = vpop.f32.mrf.mxu0
    %v349 = vadd.f32 0.0, %v348
    %v350 = vpop.f32.mrf.mxu0
    %v351 = vpop.f32.mrf.mxu0
    %v352 = vpop.f32.mrf.mxu0
    %353 = vdwg.mxu0
    %354 = vmatprep.subr.bf16.mxu0 0
    %355 = vmatpush1.bf16.msra.mxu0 1065369472
    %356 = vmatprep.subr.bf16.mxu0 0
    %357 = vmatpush1.bf16.msra.mxu0 1065369472
    %358 = vmatprep.subr.bf16.mxu0 0
    %359 = vmatpush1.bf16.msra.mxu0 1065369472
    %360 = vmatprep.subr.bf16.mxu0 0
    %361 = vmatpush1.bf16.msra.mxu0 1065369472
    %362 = vmatprep.subr.bf16.mxu0 0
    %363 = vmatpush1.bf16.msra.mxu0 1065369472
    %364 = vmatprep.subr.bf16.mxu0 0
    %365 = vmatpush1.bf16.msra.mxu0 1065369472
    %366 = vmatprep.subr.bf16.mxu0 0
    %367 = vmatpush1.bf16.msra.mxu0 1065369472
    %368 = vmatprep.subr.bf16.mxu0 0
    %369 = vmatpush1.bf16.msra.mxu0 1065369472
    %370 = vmatprep.subr.bf16.mxu0 0
    %371 = vmatpush2.bf16.msra.mxu0 0
    %372 = vmatprep.subr.bf16.mxu0 0
    %373 = vmatpush2.bf16.msra.mxu0 0
    %374 = vmatprep.subr.bf16.mxu0 0
    %375 = vmatpush2.bf16.msra.mxu0 0
    %376 = vmatprep.subr.bf16.mxu0 0
    %377 = vmatpush2.bf16.msra.mxu0 0
    %378 = vmatprep.subr.bf16.mxu0 0
    %379 = vmatpush2.bf16.msra.mxu0 0
    %380 = vmatprep.subr.bf16.mxu0 0
    %381 = vmatpush2.bf16.msra.mxu0 0
    %382 = vmatprep.subr.bf16.mxu0 0
    %383 = vmatpush2.bf16.msra.mxu0 0
    %384 = vmatprep.subr.bf16.mxu0 0
    %385 = vmatpush2.bf16.msra.mxu0 0
    %386 = vmatprep.mubr.bf16.mxu0 0
    %387 = vmatmul.mubr.bf16.gmra.mxu0 %v310
    %v388 = vpop.f32.mrf.mxu0
    %v389 = vadd.f32 %v349, %v388
    %v390 = vpop.f32.mrf.mxu0
    %v391 = vpop.f32.mrf.mxu0
    %v392 = vpop.f32.mrf.mxu0
    %393 = vdwg.mxu0
    %v394 = vmul.f32 %v53, %v52
    %v395 = vpack.c.bf16 %v394, %v394
    %v396 = vunpack.c.l.bf16 %v395
    %v397 = vsub.f32 %v394, %v396
    %v398 = vpack.c.bf16 %v397, %v397
    %399 = vmatprep.subr.bf16.mxu0 0
    %400 = vmatpush1.bf16.msra.mxu0 1065369472
    %401 = vmatprep.subr.bf16.mxu0 0
    %402 = vmatpush1.bf16.msra.mxu0 1065369472
    %403 = vmatprep.subr.bf16.mxu0 0
    %404 = vmatpush1.bf16.msra.mxu0 1065369472
    %405 = vmatprep.subr.bf16.mxu0 0
    %406 = vmatpush1.bf16.msra.mxu0 1065369472
    %407 = vmatprep.subr.bf16.mxu0 0
    %408 = vmatpush1.bf16.msra.mxu0 1065369472
    %409 = vmatprep.subr.bf16.mxu0 0
    %410 = vmatpush1.bf16.msra.mxu0 1065369472
    %411 = vmatprep.subr.bf16.mxu0 0
    %412 = vmatpush1.bf16.msra.mxu0 1065369472
    %413 = vmatprep.subr.bf16.mxu0 0
    %414 = vmatpush1.bf16.msra.mxu0 1065369472
    %415 = vmatprep.subr.bf16.mxu0 0
    %416 = vmatpush2.bf16.msra.mxu0 0
    %417 = vmatprep.subr.bf16.mxu0 0
    %418 = vmatpush2.bf16.msra.mxu0 0
    %419 = vmatprep.subr.bf16.mxu0 0
    %420 = vmatpush2.bf16.msra.mxu0 0
    %421 = vmatprep.subr.bf16.mxu0 0
    %422 = vmatpush2.bf16.msra.mxu0 0
    %423 = vmatprep.subr.bf16.mxu0 0
    %424 = vmatpush2.bf16.msra.mxu0 0
    %425 = vmatprep.subr.bf16.mxu0 0
    %426 = vmatpush2.bf16.msra.mxu0 0
    %427 = vmatprep.subr.bf16.mxu0 0
    %428 = vmatpush2.bf16.msra.mxu0 0
    %429 = vmatprep.subr.bf16.mxu0 0
    %430 = vmatpush2.bf16.msra.mxu0 0
    %431 = vmatprep.mubr.bf16.mxu0 0
    %432 = vmatmul.mubr.bf16.gmra.mxu0 %v398
    %v433 = vpop.f32.mrf.mxu0
    %v434 = vadd.f32 0.0, %v433
    %v435 = vpop.f32.mrf.mxu0
    %v436 = vpop.f32.mrf.mxu0
    %v437 = vpop.f32.mrf.mxu0
    %438 = vdwg.mxu0
    %439 = vmatprep.subr.bf16.mxu0 0
    %440 = vmatpush1.bf16.msra.mxu0 1065369472
    %441 = vmatprep.subr.bf16.mxu0 0
    %442 = vmatpush1.bf16.msra.mxu0 1065369472
    %443 = vmatprep.subr.bf16.mxu0 0
    %444 = vmatpush1.bf16.msra.mxu0 1065369472
    %445 = vmatprep.subr.bf16.mxu0 0
    %446 = vmatpush1.bf16.msra.mxu0 1065369472
    %447 = vmatprep.subr.bf16.mxu0 0
    %448 = vmatpush1.bf16.msra.mxu0 1065369472
    %449 = vmatprep.subr.bf16.mxu0 0
    %450 = vmatpush1.bf16.msra.mxu0 1065369472
    %451 = vmatprep.subr.bf16.mxu0 0
    %452 = vmatpush1.bf16.msra.mxu0 1065369472
    %453 = vmatprep.subr.bf16.mxu0 0
    %454 = vmatpush1.bf16.msra.mxu0 1065369472
    %455 = vmatprep.subr.bf16.mxu0 0
    %456 = vmatpush2.bf16.msra.mxu0 0
    %457 = vmatprep.subr.bf16.mxu0 0
    %458 = vmatpush2.bf16.msra.mxu0 0
    %459 = vmatprep.subr.bf16.mxu0 0
    %460 = vmatpush2.bf16.msra.mxu0 0
    %461 = vmatprep.subr.bf16.mxu0 0
    %462 = vmatpush2.bf16.msra.mxu0 0
    %463 = vmatprep.subr.bf16.mxu0 0
    %464 = vmatpush2.bf16.msra.mxu0 0
    %465 = vmatprep.subr.bf16.mxu0 0
    %466 = vmatpush2.bf16.msra.mxu0 0
    %467 = vmatprep.subr.bf16.mxu0 0
    %468 = vmatpush2.bf16.msra.mxu0 0
    %469 = vmatprep.subr.bf16.mxu0 0
    %470 = vmatpush2.bf16.msra.mxu0 0
    %471 = vmatprep.mubr.bf16.mxu0 0
    %472 = vmatmul.mubr.bf16.gmra.mxu0 %v395
    %v473 = vpop.f32.mrf.mxu0
    %v474 = vadd.f32 %v434, %v473
    %v475 = vpop.f32.mrf.mxu0
    %v476 = vpop.f32.mrf.mxu0
    %v477 = vpop.f32.mrf.mxu0
    %478 = vdwg.mxu0
    %v479 = vmax.f32 %v219, 1e-12
    %v480 = vrsqrt.pop %v479
    %v481 = vmax.f32 %v134, 1e-12
    %v482 = vrsqrt.pop %v481
    %v483 = vmul.f32 %v389, %v482
    %v484 = vmul.f32 %v483, %v480
    %v485 = vmax.f32 %v304, 1e-12
    %v486 = vrsqrt.pop %v485
    %v487 = vmul.f32 %v474, %v486
    %v488 = vmul.f32 %v487, %v480
    %v489 = vsub.f32 %v488, %v484
    %v490 = vmul.f32 %v489, 1.442695
    %v491 = vpow.pop %v490
    %v492 = vadd.f32 %v491, 1.0
    %v493 = vlog2.pop %v492
    %v494 = vmul.f32 %v493, 0.6931472
    %v495 = vmul.f32 -0.5, %v491
    %v496 = vadd.f32 %v495, 1.0
    %v497 = vmul.f32 %v496, %v491
    %v498 = vand.u32 2147483647, %v491
    %vm499 = vcmp.lt.f32.partialorder %v498, 0.0004427343
    %v500 = vsel %vm499, %v497, %v494
    %s501 = smul.u32 0, 8
    %v502 = vlaneseq
    %v503 = vshrl.u32 %v502, 7
    %v504 = vstv %s501
    %v505 = vadd.s32 %v504, %v503
    %vm506 = vcmp.lt.s32.totalorder %v505, 8
    %v507 = vsel %vm506, %v500, 0.0
    %vm508 = vcmask 7168
    %509 = vst.msk [vmem:[%s3] sm:$0xff] %vm508, %v507
    // Predicated region
    $region26: #{tpu_custom_call.1} parent=1 // pred_check
      _
    $region27: #{tpu_custom_call.1} parent=1 // pred_check_branch
      %511 = sbr.rel (0) target = $region29
    $region28: #{tpu_custom_call.1} parent=1 // pred_region
      _
    $region29: #{tpu_custom_call.1} parent=1 // pred_fallthru
      _
    // Predicated region
    $region30: #{tpu_custom_call.1} parent=1 // pred_check
      _
    $region31: #{tpu_custom_call.1} parent=1 // pred_check_branch
      %513 = sbr.rel (0) target = $region33
    $region32: #{tpu_custom_call.1} parent=1 // pred_region
      _
    $region33: #{tpu_custom_call.1} parent=1 // pred_fallthru
      _
    %514 = vsyncpa [#allocation3], 1
    %515 = vsyncpa [#allocation5], 1

</llo_original>
